<compile_context>
chip_gen: v7x
topology: tpu7x:2x2x1
jax: 0.10.0
libtpu: 0.0.40
codegen_flags: <defaults>
</compile_context>

<pallas_src>
import numpy as np
import jax
import jax.numpy as jnp
from jax.experimental import pallas as pl
from jax.experimental.pallas import tpu as pltpu

_NEG_BIG = -1e30  # additive mask value for padded cluster columns


def _round_up(x, m):
    return ((x + m - 1) // m) * m


def _make_cluster_kernel(with_logits, inv_batch):
    """Grid = (level, batch-tile, cluster-tile).  The cluster-tile axis is the innermost
    reduction axis; cross-entropy is computed with a flash-style online log-sum-exp."""

    def kernel(ks_ref, embs_ref, protos_t_ref, inv_d_ref, labels_ref, *rest):
        if with_logits:
            losses_ref, logits_ref, m_sc, l_sc, t_sc = rest
        else:
            (losses_ref, m_sc, l_sc, t_sc), logits_ref = rest, None

        lvl = pl.program_id(0)
        kt = pl.program_id(2)

        @pl.when(kt == 0)
        def _():
            m_sc[...] = jnp.full_like(m_sc, -jnp.inf)
            l_sc[...] = jnp.zeros_like(l_sc)
            t_sc[...] = jnp.zeros_like(t_sc)

        labels = labels_ref[...]                      # (tb, 1) int32; padded batch rows == -1
        k_valid = ks_ref[lvl]                         # this level's true #clusters (SMEM scalar)

        # MXU matmul (f32 accumulation); column scale via precomputed reciprocal density.
        logits = jnp.dot(embs_ref[...], protos_t_ref[...],
                         preferred_element_type=jnp.float32)        # (tb, tk)
        logits = logits * inv_d_ref[...]
        tb, tk = logits.shape
        col = jax.lax.broadcasted_iota(jnp.int32, (tb, tk), 1) + kt * tk
        logits = jnp.where(col < k_valid, logits, _NEG_BIG)          # mask padded cluster cols

        if with_logits:
            logits_ref[...] = logits   # lane-dense (tk multiple of 128) store, info path only

        # Online (flash-style) log-sum-exp accumulation over cluster tiles.
        m_old = m_sc[...]
        m_new = jnp.maximum(m_old, jnp.max(logits, axis=-1, keepdims=True))
        alpha = jnp.exp(m_old - m_new)
        l_sc[...] = alpha * l_sc[...] + jnp.sum(jnp.exp(logits - m_new), axis=-1, keepdims=True)
        m_sc[...] = m_new
        # The target column falls in exactly one cluster tile; padded rows (label=-1) never match.
        t_sc[...] += jnp.sum(jnp.where(col == labels, logits, 0.0), axis=-1, keepdims=True)

        @pl.when(kt == pl.num_programs(2) - 1)
        def _():
            lse = m_new + jnp.log(l_sc[...])                         # (tb, 1)
            per_row = jnp.where(labels >= 0, lse - t_sc[...], 0.0)   # drop padded batch rows
            tile_loss = jnp.sum(per_row) * inv_batch                 # this tile's share of mean CE
            losses_ref[...] = jnp.zeros_like(losses_ref) + tile_loss

    return kernel


def prepare_cluster_inputs(clusters, compute_dtype):
    """Prototype transpose/pad + reciprocal density + valid-K table.  Static within a
    clustering epoch -- cache the result and pass it to cluster_loss_forward(prepared=...)."""
    centroids = clusters['centroids']
    densities = clusters['density']
    L = len(centroids)
    D = int(centroids[0].shape[1])
    Ks = [int(p.shape[0]) for p in centroids]
    max_k = max(Ks)
    kp128 = _round_up(max_k, 128)
    tk = 512 if kp128 >= 512 else kp128      # >=512 keeps lane-dense stores; 512 % 256 == 0 (v6e/v7x MXU)
    Kp = _round_up(max_k, tk)

    protos_t = jnp.stack([
        jnp.pad(p.astype(compute_dtype).T, ((0, 0), (0, Kp - p.shape[0])))
        for p in centroids])                                          # (L, D, Kp) pre-transposed
    inv_density = jnp.stack([
        jnp.pad(1.0 / d.astype(jnp.float32), (0, Kp - d.shape[0]), constant_values=1.0)
        for d in densities]).reshape(L, 1, Kp)                        # (L, 1, Kp)
    ks_arr = jnp.asarray(Ks, dtype=jnp.int32)                         # (L,) scalar-prefetch

    return dict(L=L, D=D, Ks=Ks, Kp=Kp, tk=tk, compute_dtype=compute_dtype,
                protos_t=protos_t, inv_density=inv_density, ks_arr=ks_arr)


def cluster_loss_forward(embs, idx, clusters, return_info=True, prepared=None):
    """JAX/Pallas equivalent of ClusterLoss.forward (intended semantics).

    embs:     (B, D) float32 or bfloat16
    idx:      (B,) int indices into the dataset (or dict with 'cluster_target')
    clusters: dict with lists 'idx2cluster' [(N,)], 'centroids' [(K_l, D)], 'density' [(K_l,)].
    """
    if isinstance(idx, dict):
        idx = idx['cluster_target']

    B, D = embs.shape
    compute_dtype = embs.dtype if embs.dtype in (jnp.bfloat16, jnp.float32) else jnp.float32
    if prepared is None:
        prepared = prepare_cluster_inputs(clusters, compute_dtype)
    L, Kp, tk, Ks = prepared['L'], prepared['Kp'], prepared['tk'], prepared['Ks']
    assert prepared['D'] == D

    # Batch tiling: tb multiple of 8 (sublane), capped at 256 (fills the 256x256 MXU).
    tb = min(256, _round_up(B, 8))
    Bp = _round_up(B, tb)
    nbt, nkt = Bp // tb, Kp // tk

    embs_p = jnp.pad(embs.astype(compute_dtype), ((0, Bp - B), (0, 0)))
    # Labels per level (gather stays in plain JAX); padded batch rows get -1.
    labels_stack = jnp.stack([
        jnp.pad(i2c[idx].astype(jnp.int32), (0, Bp - B), constant_values=-1)
        for i2c in clusters['idx2cluster']]).reshape(L, Bp, 1)

    # Explicit VMEM budget: double-buffered blocks + scratch + headroom.
    itemsize = jnp.dtype(compute_dtype).itemsize
    block_bytes = tb * D * itemsize + D * tk * itemsize + tk * 4 + tb * 4 + 8 * 128 * 4
    if return_info:
        block_bytes += tb * tk * 4
    vmem_limit = int(min(max(2 * block_bytes + 3 * tb * 4 + (2 << 20), 32 << 20), 100 << 20))

    losses_shape = jax.ShapeDtypeStruct((L, nbt, 8, 128), jnp.float32)
    losses_spec = pl.BlockSpec((1, 1, 8, 128), lambda l, b, kt, ks: (l, b, 0, 0))
    if return_info:
        out_shape = (losses_shape, jax.ShapeDtypeStruct((L, Bp, Kp), jnp.float32))
        out_specs = (losses_spec,
                     pl.BlockSpec((None, tb, tk), lambda l, b, kt, ks: (l, b, kt)))
    else:
        out_shape = (losses_shape,)
        out_specs = (losses_spec,)

    grid_spec = pltpu.PrefetchScalarGridSpec(
        num_scalar_prefetch=1,
        grid=(L, nbt, nkt),
        in_specs=[
            pl.BlockSpec((tb, D), lambda l, b, kt, ks: (b, 0)),          # embs (batch tile)
            pl.BlockSpec((None, D, tk), lambda l, b, kt, ks: (l, 0, kt)),  # pre-transposed protos
            pl.BlockSpec((None, 1, tk), lambda l, b, kt, ks: (l, 0, kt)),  # 1/density
            pl.BlockSpec((None, tb, 1), lambda l, b, kt, ks: (l, b, 0)),   # labels
        ],
        out_specs=out_specs,
        scratch_shapes=[pltpu.VMEM((tb, 1), jnp.float32)] * 3,            # m, l, target-logit
    )

    outs = pl.pallas_call(
        _make_cluster_kernel(return_info, 1.0 / B),
        out_shape=out_shape,
        grid_spec=grid_spec,
        compiler_params=pltpu.CompilerParams(
            # level & batch-tile axes are independent -> megacore-parallel (v7x 2 TCs);
            # the cluster-tile axis carries the online-LSE accumulator -> arbitrary.
            dimension_semantics=("parallel", "parallel", "arbitrary"),
            vmem_limit_bytes=vmem_limit),
    )(prepared['ks_arr'], embs_p, prepared['protos_t'],
      prepared['inv_density'], labels_stack)

    per_level = jnp.sum(outs[0][:, :, 0, 0], axis=1)    # (L,) mean CE per level, on device
    loss = jnp.mean(per_level)

    info = {}
    if return_info:
        # Single device->host transfer, after all device work has been issued.
        per_level_np = np.asarray(per_level)
        logits_np = np.asarray(outs[1])
        labels_np = np.asarray(labels_stack[:, :B, 0])
        for li, k in enumerate(Ks):
            info[f'CLUSTER_{k}_loss'] = float(per_level_np[li])
            info[f'CLUSTER_{k}_logits_labels'] = (logits_np[li, :B, :k], labels_np[li])

    # Faithful-to-the-bug output of the original module would be: (0.0, {}).
    return loss, info


def _reference_forward(embs, idx, clusters):
    """Pure-JAX reference for numerical validation (intended semantics)."""
    losses, per_level_logits = [], []
    for idx2cluster, prototypes, density in zip(
            clusters['idx2cluster'], clusters['centroids'], clusters['density']):
        logits = (embs @ prototypes.T) / density[None, :]
        labels = idx2cluster[idx]
        logp = jax.nn.log_softmax(logits, axis=-1)
        ce = -jnp.take_along_axis(logp, labels[:, None], axis=-1).mean()
        losses.append(ce)
        per_level_logits.append(logits)
    return sum(losses) / len(losses), losses, per_level_logits


if __name__ == "__main__":
    key = jax.random.PRNGKey(0)
    B, D, N = 8, 32, 64          # batch, embedding dim, dataset size
    level_ks = (8, 16)           # clusters per level

    k_embs, k_idx, *k_levels = jax.random.split(key, 2 + 2 * len(level_ks))

    embs = jax.random.normal(k_embs, (B, D), dtype=jnp.float32)
    idx = jax.random.randint(k_idx, (B,), 0, N, dtype=jnp.int32)

    clusters = {'idx2cluster': [], 'centroids': [], 'density': []}
    for li, K in enumerate(level_ks):
        kc, kd = jax.random.split(k_levels[li])
        clusters['centroids'].append(jax.random.normal(kc, (K, D), dtype=jnp.float32))
        clusters['density'].append(0.5 + jnp.abs(jax.random.normal(kd, (K,), dtype=jnp.float32)))
        clusters['idx2cluster'].append(
            jax.random.randint(k_levels[li], (N,), 0, K, dtype=jnp.int32))

    # Full path (loss + info: logits writeback enabled).
    loss, info = cluster_loss_forward(embs, {'cluster_target': idx}, clusters, return_info=True)
    loss = jax.block_until_ready(loss)

    # Loss-only path (no logits output at all) -- the fast training-step variant.
    loss_fast, _ = cluster_loss_forward(embs, idx, clusters, return_info=False)
    loss_fast = jax.block_until_ready(loss_fast)

    ref_loss, ref_level_losses, ref_logits = _reference_forward(embs, idx, clusters)
    ref_loss = jax.block_until_ready(ref_loss)

    np.testing.assert_allclose(np.asarray(loss), np.asarray(ref_loss), rtol=1e-5, atol=1e-5)
    np.testing.assert_allclose(np.asarray(loss_fast), np.asarray(ref_loss), rtol=1e-5, atol=1e-5)
    for li, K in enumerate(level_ks):
        np.testing.assert_allclose(info[f'CLUSTER_{K}_loss'],
                                   np.asarray(ref_level_losses[li]), rtol=1e-5, atol=1e-5)
        np.testing.assert_allclose(info[f'CLUSTER_{K}_logits_labels'][0],
                                   np.asarray(ref_logits[li]), rtol=1e-5, atol=1e-5)

    print("KERNEL_OK")
</pallas_src>

<mosaic_0001>
module attributes {stable_mosaic.version = 11 : i64} {
  func.func @kernel(%arg0: i32, %arg1: i32, %arg2: i32, %arg3: memref<2xi32, #tpu.memory_space<smem>>, %arg4: memref<8x32xf32, #tpu.memory_space<vmem>>, %arg5: memref<1x32x128xf32, #tpu.memory_space<vmem>>, %arg6: memref<1x1x128xf32, #tpu.memory_space<vmem>>, %arg7: memref<1x8x1xi32, #tpu.memory_space<vmem>>, %arg8: memref<1x1x8x128xf32, #tpu.memory_space<vmem>>, %arg9: memref<1x8x128xf32, #tpu.memory_space<vmem>>, %arg10: memref<8x1xf32, #tpu.memory_space<vmem>>, %arg11: memref<8x1xf32, #tpu.memory_space<vmem>>, %arg12: memref<8x1xf32, #tpu.memory_space<vmem>>) attributes {dimension_semantics = [#tpu.dimension_semantics<parallel>, #tpu.dimension_semantics<parallel>, #tpu.dimension_semantics<arbitrary>], iteration_bounds = array<i64: 2, 1, 1>, scalar_prefetch = 1 : i64, scratch_operands = 3 : i64, tpu.core_type = #tpu.core_type<tc>, window_params = [{transform_indices = @transform_0, window_bounds = array<i64: 8, 32>}, {transform_indices = @transform_1, window_bounds = array<i64: 1, 32, 128>}, {transform_indices = @transform_2, window_bounds = array<i64: 1, 1, 128>}, {transform_indices = @transform_3, window_bounds = array<i64: 1, 8, 1>}, {transform_indices = @transform_4, window_bounds = array<i64: 1, 1, 8, 128>}, {transform_indices = @transform_5, window_bounds = array<i64: 1, 8, 128>}]} {
    %c0_i32 = arith.constant 0 : i32
    %0 = arith.cmpi eq, %arg2, %c0_i32 : i32
    %1 = arith.extui %0 : i1 to i32
    %c0_i32_0 = arith.constant 0 : i32
    %2 = arith.cmpi ne, %1, %c0_i32_0 : i32
    scf.if %2 {
      %cst_33 = arith.constant 0xFF800000 : f32
      %54 = vector.broadcast %cst_33 : f32 to vector<8x1xf32>
      %c0_34 = arith.constant 0 : index
      %c0_35 = arith.constant 0 : index
      %55 = vector.load %arg10[%c0_34, %c0_35] : memref<8x1xf32, #tpu.memory_space<vmem>>, vector<8x1xf32>
      tpu.vector_store %arg10[%c0_34, %c0_35], %54 {strides = array<i32>} : memref<8x1xf32, #tpu.memory_space<vmem>>, vector<8x1xf32>,
      %cst_36 = arith.constant 0.000000e+00 : f32
      %56 = vector.broadcast %cst_36 : f32 to vector<8x1xf32>
      %c0_37 = arith.constant 0 : index
      %c0_38 = arith.constant 0 : index
      %57 = vector.load %arg11[%c0_37, %c0_38] : memref<8x1xf32, #tpu.memory_space<vmem>>, vector<8x1xf32>
      tpu.vector_store %arg11[%c0_37, %c0_38], %56 {strides = array<i32>} : memref<8x1xf32, #tpu.memory_space<vmem>>, vector<8x1xf32>,
      %cst_39 = arith.constant 0.000000e+00 : f32
      %58 = vector.broadcast %cst_39 : f32 to vector<8x1xf32>
      %c0_40 = arith.constant 0 : index
      %c0_41 = arith.constant 0 : index
      %59 = vector.load %arg12[%c0_40, %c0_41] : memref<8x1xf32, #tpu.memory_space<vmem>>, vector<8x1xf32>
      tpu.vector_store %arg12[%c0_40, %c0_41], %58 {strides = array<i32>} : memref<8x1xf32, #tpu.memory_space<vmem>>, vector<8x1xf32>,
    } else {
    }
    %c0 = arith.constant 0 : index
    %c0_1 = arith.constant 0 : index
    %c0_2 = arith.constant 0 : index
    %3 = vector.load %arg7[%c0, %c0_1, %c0_2] : memref<1x8x1xi32, #tpu.memory_space<vmem>>, vector<1x8x1xi32>
    %4 = vector.shape_cast %3 : vector<1x8x1xi32> to vector<8x1xi32>
    %5 = arith.index_cast %arg0 : i32 to index
    %6 = memref.load %arg3[%5] : memref<2xi32, #tpu.memory_space<smem>>
    %c0_3 = arith.constant 0 : index
    %c0_4 = arith.constant 0 : index
    %7 = vector.load %arg4[%c0_3, %c0_4] : memref<8x32xf32, #tpu.memory_space<vmem>>, vector<8x32xf32>
    %c0_5 = arith.constant 0 : index
    %c0_6 = arith.constant 0 : index
    %c0_7 = arith.constant 0 : index
    %8 = vector.load %arg5[%c0_5, %c0_6, %c0_7] : memref<1x32x128xf32, #tpu.memory_space<vmem>>, vector<1x32x128xf32>
    %9 = vector.shape_cast %8 : vector<1x32x128xf32> to vector<32x128xf32>
    %cst = arith.constant dense<0.000000e+00> : vector<8x128xf32>
    %10 = tpu.matmul %7, %9, %cst {dimension_numbers = #tpu.dot_dimension_numbers<[1], [0], [0], [1], [0, 0, 1, 1], [], []>} : vector<8x32xf32>, vector<32x128xf32>, vector<8x128xf32> -> vector<8x128xf32>
    %c0_8 = arith.constant 0 : index
    %c0_9 = arith.constant 0 : index
    %c0_10 = arith.constant 0 : index
    %11 = vector.load %arg6[%c0_8, %c0_9, %c0_10] : memref<1x1x128xf32, #tpu.memory_space<vmem>>, vector<1x1x128xf32>
    %12 = vector.shape_cast %11 : vector<1x1x128xf32> to vector<1x128xf32>
    %13 = vector.broadcast %12 : vector<1x128xf32> to vector<8x128xf32>
    %14 = arith.mulf %10, %13 : vector<8x128xf32>
    %15 = tpu.iota {dimensions = array<i32: 1>} : vector<8x128xi32>
    %c128_i32 = arith.constant 128 : i32
    %16 = arith.muli %arg2, %c128_i32 : i32
    %17 = vector.broadcast %16 : i32 to vector<8x128xi32>
    %18 = arith.addi %15, %17 : vector<8x128xi32>
    %19 = vector.broadcast %6 : i32 to vector<8x128xi32>
    %20 = arith.cmpi slt, %18, %19 : vector<8x128xi32>
    %cst_11 = arith.constant -1.000000e+30 : f32
    %21 = vector.broadcast %cst_11 : f32 to vector<8x128xf32>
    %22 = arith.select %20, %14, %21 : vector<8x128xi1>, vector<8x128xf32>
    %c0_12 = arith.constant 0 : index
    %c0_13 = arith.constant 0 : index
    %c0_14 = arith.constant 0 : index
    %23 = vector.load %arg9[%c0_12, %c0_13, %c0_14] : memref<1x8x128xf32, #tpu.memory_space<vmem>>, vector<1x8x128xf32>
    %24 = vector.shape_cast %23 : vector<1x8x128xf32> to vector<8x128xf32>
    %25 = vector.shape_cast %22 : vector<8x128xf32> to vector<1x8x128xf32>
    tpu.vector_store %arg9[%c0_12, %c0_13, %c0_14], %25 {strides = array<i32>} : memref<1x8x128xf32, #tpu.memory_space<vmem>>, vector<1x8x128xf32>,
    %c0_15 = arith.constant 0 : index
    %c0_16 = arith.constant 0 : index
    %26 = vector.load %arg10[%c0_15, %c0_16] : memref<8x1xf32, #tpu.memory_space<vmem>>, vector<8x1xf32>
    %cst_17 = arith.constant dense<0xFF800000> : vector<8xf32>
    %27 = vector.multi_reduction <maximumf>, %22, %cst_17 [1] : vector<8x128xf32> to vector<8xf32>
    %28 = vector.shape_cast %27 : vector<8xf32> to vector<8x1xf32>
    %29 = arith.maximumf %26, %28 : vector<8x1xf32>
    %30 = arith.subf %26, %29 : vector<8x1xf32>
    %31 = math.exp %30 : vector<8x1xf32>
    %c0_18 = arith.constant 0 : index
    %c0_19 = arith.constant 0 : index
    %32 = vector.load %arg11[%c0_18, %c0_19] : memref<8x1xf32, #tpu.memory_space<vmem>>, vector<8x1xf32>
    %33 = arith.mulf %31, %32 : vector<8x1xf32>
    %34 = vector.broadcast %29 : vector<8x1xf32> to vector<8x128xf32>
    %35 = arith.subf %22, %34 : vector<8x128xf32>
    %36 = math.exp %35 : vector<8x128xf32>
    %cst_20 = arith.constant dense<0.000000e+00> : vector<8xf32>
    %37 = vector.multi_reduction <add>, %36, %cst_20 [1] : vector<8x128xf32> to vector<8xf32>
    %38 = vector.shape_cast %37 : vector<8xf32> to vector<8x1xf32>
    %39 = arith.addf %33, %38 : vector<8x1xf32>
    %c0_21 = arith.constant 0 : index
    %c0_22 = arith.constant 0 : index
    %40 = vector.load %arg11[%c0_21, %c0_22] : memref<8x1xf32, #tpu.memory_space<vmem>>, vector<8x1xf32>
    tpu.vector_store %arg11[%c0_21, %c0_22], %39 {strides = array<i32>} : memref<8x1xf32, #tpu.memory_space<vmem>>, vector<8x1xf32>,
    %c0_23 = arith.constant 0 : index
    %c0_24 = arith.constant 0 : index
    %41 = vector.load %arg10[%c0_23, %c0_24] : memref<8x1xf32, #tpu.memory_space<vmem>>, vector<8x1xf32>
    tpu.vector_store %arg10[%c0_23, %c0_24], %29 {strides = array<i32>} : memref<8x1xf32, #tpu.memory_space<vmem>>, vector<8x1xf32>,
    %c0_25 = arith.constant 0 : index
    %c0_26 = arith.constant 0 : index
    %42 = vector.load %arg12[%c0_25, %c0_26] : memref<8x1xf32, #tpu.memory_space<vmem>>, vector<8x1xf32>
    %43 = vector.broadcast %4 : vector<8x1xi32> to vector<8x128xi32>
    %44 = arith.cmpi eq, %18, %43 : vector<8x128xi32>
    %cst_27 = arith.constant 0.000000e+00 : f32
    %45 = vector.broadcast %cst_27 : f32 to vector<8x128xf32>
    %46 = arith.select %44, %22, %45 : vector<8x128xi1>, vector<8x128xf32>
    %cst_28 = arith.constant dense<0.000000e+00> : vector<8xf32>
    %47 = vector.multi_reduction <add>, %46, %cst_28 [1] : vector<8x128xf32> to vector<8xf32>
    %48 = vector.shape_cast %47 : vector<8xf32> to vector<8x1xf32>
    %49 = arith.addf %42, %48 : vector<8x1xf32>
    %c0_29 = arith.constant 0 : index
    %c0_30 = arith.constant 0 : index
    %50 = vector.load %arg12[%c0_29, %c0_30] : memref<8x1xf32, #tpu.memory_space<vmem>>, vector<8x1xf32>
    tpu.vector_store %arg12[%c0_29, %c0_30], %49 {strides = array<i32>} : memref<8x1xf32, #tpu.memory_space<vmem>>, vector<8x1xf32>,
    %c0_i32_31 = arith.constant 0 : i32
    %51 = arith.cmpi eq, %arg2, %c0_i32_31 : i32
    %52 = arith.extui %51 : i1 to i32
    %c0_i32_32 = arith.constant 0 : i32
    %53 = arith.cmpi ne, %52, %c0_i32_32 : i32
    scf.if %53 {
      %c0_33 = arith.constant 0 : index
      %c0_34 = arith.constant 0 : index
      %54 = vector.load %arg11[%c0_33, %c0_34] : memref<8x1xf32, #tpu.memory_space<vmem>>, vector<8x1xf32>
      %55 = math.log %54 : vector<8x1xf32>
      %56 = arith.addf %29, %55 : vector<8x1xf32>
      %c0_i32_35 = arith.constant 0 : i32
      %57 = vector.broadcast %c0_i32_35 : i32 to vector<8x1xi32>
      %58 = arith.cmpi sge, %4, %57 : vector<8x1xi32>
      %c0_36 = arith.constant 0 : index
      %c0_37 = arith.constant 0 : index
      %59 = vector.load %arg12[%c0_36, %c0_37] : memref<8x1xf32, #tpu.memory_space<vmem>>, vector<8x1xf32>
      %60 = arith.subf %56, %59 : vector<8x1xf32>
      %cst_38 = arith.constant 0.000000e+00 : f32
      %61 = vector.broadcast %cst_38 : f32 to vector<8x1xf32>
      %62 = arith.select %58, %60, %61 : vector<8x1xi1>, vector<8x1xf32>
      %63 = vector.shape_cast %62 : vector<8x1xf32> to vector<1x8x1xf32>
      %cst_39 = arith.constant dense<0.000000e+00> : vector<1xf32>
      %64 = vector.multi_reduction <add>, %63, %cst_39 [1, 2] : vector<1x8x1xf32> to vector<1xf32>
      %65 = vector.shape_cast %64 : vector<1xf32> to vector<1x1x1xf32>
      %66 = vector.extract %65[0, 0, 0] : f32 from vector<1x1x1xf32>
      %cst_40 = arith.constant 1.250000e-01 : f32
      %67 = arith.mulf %66, %cst_40 : f32
      %cst_41 = arith.constant 0.000000e+00 : f32
      %68 = vector.broadcast %cst_41 : f32 to vector<1x1x8x128xf32>
      %69 = vector.broadcast %67 : f32 to vector<1x1x8x128xf32>
      %70 = arith.addf %68, %69 : vector<1x1x8x128xf32>
      %c0_42 = arith.constant 0 : index
      %c0_43 = arith.constant 0 : index
      %c0_44 = arith.constant 0 : index
      %c0_45 = arith.constant 0 : index
      %71 = vector.load %arg8[%c0_42, %c0_43, %c0_44, %c0_45] : memref<1x1x8x128xf32, #tpu.memory_space<vmem>>, vector<1x1x8x128xf32>
      tpu.vector_store %arg8[%c0_42, %c0_43, %c0_44, %c0_45], %70 {strides = array<i32>} : memref<1x1x8x128xf32, #tpu.memory_space<vmem>>, vector<1x1x8x128xf32>,
    } else {
    }
    return
  }
  func.func @transform_0(%arg0: i32, %arg1: i32, %arg2: i32, %arg3: memref<2xi32, #tpu.memory_space<smem>>) -> (i32, i32) {
    %c0_i32 = arith.constant 0 : i32
    %c0_i32_0 = arith.constant 0 : i32
    return %arg1, %c0_i32 : i32, i32
  }
  func.func @transform_1(%arg0: i32, %arg1: i32, %arg2: i32, %arg3: memref<2xi32, #tpu.memory_space<smem>>) -> (i32, i32, i32) {
    %c0_i32 = arith.constant 0 : i32
    %c0_i32_0 = arith.constant 0 : i32
    return %arg0, %c0_i32, %arg2 : i32, i32, i32
  }
  func.func @transform_2(%arg0: i32, %arg1: i32, %arg2: i32, %arg3: memref<2xi32, #tpu.memory_space<smem>>) -> (i32, i32, i32) {
    %c0_i32 = arith.constant 0 : i32
    %c0_i32_0 = arith.constant 0 : i32
    return %arg0, %c0_i32, %arg2 : i32, i32, i32
  }
  func.func @transform_3(%arg0: i32, %arg1: i32, %arg2: i32, %arg3: memref<2xi32, #tpu.memory_space<smem>>) -> (i32, i32, i32) {
    %c0_i32 = arith.constant 0 : i32
    %c0_i32_0 = arith.constant 0 : i32
    return %arg0, %arg1, %c0_i32 : i32, i32, i32
  }
  func.func @transform_4(%arg0: i32, %arg1: i32, %arg2: i32, %arg3: memref<2xi32, #tpu.memory_space<smem>>) -> (i32, i32, i32, i32) {
    %c0_i32 = arith.constant 0 : i32
    %c0_i32_0 = arith.constant 0 : i32
    %c0_i32_1 = arith.constant 0 : i32
    return %arg0, %arg1, %c0_i32, %c0_i32_0 : i32, i32, i32, i32
  }
  func.func @transform_5(%arg0: i32, %arg1: i32, %arg2: i32, %arg3: memref<2xi32, #tpu.memory_space<smem>>) -> (i32, i32, i32) {
    %c0_i32 = arith.constant 0 : i32
    return %arg0, %arg1, %arg2 : i32, i32, i32
  }
}

</mosaic_0001>

<llo_original>
// kernel: tpu_custom_call.1
$region0: #{tpu_custom_call.1}
  #allocation0 [shape = 'u32[]', space=smem, size = 0x4, offset = 0x4, fixed_abs, tag = 'smem constant byte address 0x4 - core index']
  #allocation1 [shape = 'u32[144,128]{1,0:T(1,128)}', space=vmem, size = 0x12000, scoped, tag = 'internal scratch']
  #allocation2 [shape = 'f32[8,1]{1,0:T(8,128)}', space=vmem, size = 0x1000, scoped, tag = 'scratch operand']
  #allocation3 [shape = 'f32[8,1]{1,0:T(8,128)}', space=vmem, size = 0x1000, scoped, tag = 'scratch operand']
  #allocation4 [shape = 'f32[8,1]{1,0:T(8,128)}', space=vmem, size = 0x1000, scoped, tag = 'scratch operand']
  #allocation5 [shape = 's32[1]{0}', space=sflag, size = 0x4, scoped, tag = 'scoped memory for tpu_custom_call.1']
  #allocation6 [shape = 'u8[512]{0}', space=smem, size = 0x200, scoped, tag = 'prefetched SMEM operand 0']
  %s0 = inlined_call_operand.vmem [shape: s32[2], index: 0, kind: input, shape index: {}]
  %s1 = inlined_call_operand.vmem [shape: f32[8,32], index: 1, kind: input, shape index: {}]
  %s2 = inlined_call_operand.hbm [shape: f32[2,32,128], index: 2, kind: input, shape index: {}]
  %s3 = inlined_call_operand.vmem [shape: f32[2,1,128], index: 3, kind: input, shape index: {}]
  %s4 = inlined_call_operand.vmem [shape: s32[2,8,1], index: 4, kind: input, shape index: {}]
  %s5 = inlined_call_operand.hbm [shape: f32[2,1,8,128], index: 5, kind: output, shape index: {0}]
  %s6 = inlined_call_operand.hbm [shape: f32[2,8,128], index: 6, kind: output, shape index: {1}]
  %7 = xla_tuple %s5, %s6
  %s8 = sld [smem:[#allocation0]]
  $region69: #{tpu_custom_call.1} parent=0
    _
  %s10 = ssub.s32 1, %s8
  %s11 = scalar_select 0, %s10, %s8
  %s12 = sshll.u32 %s0, 4
  %s13 = int_to_ptr.vmem [resolvable:$true] %s12
  %15 = dma.vmem_to_smem %s13, 16, [#allocation6], [#allocation5]
  %16 = dma.done [#allocation5], 16
  %17 = sfence
  $region1: #{tpu_custom_call.1} parent=0
    #allocation7 [shape = 'u8[32768]{0}', space=vmem, size = 0x8000, scoped, tag = 'input window, operand 2']
    #allocation8 [shape = 's32[2]{0}', space=sflag, size = 0x8, scoped, tag = 'scoped memory for tpu_custom_call.1']
    #allocation9 [shape = 's32[2]{0}', space=sflag, size = 0x8, scoped, tag = 'scoped memory for tpu_custom_call.1']
    #allocation10 [shape = 'u8[8192]{0}', space=vmem, size = 0x2000, scoped, tag = 'output window, operand 0']
    #allocation11 [shape = 'u8[8192]{0}', space=vmem, size = 0x2000, scoped, tag = 'output window, operand 1']
    #allocation12 [shape = 's32[2]{0}', space=sflag, size = 0x8, scoped, tag = 'scoped memory for tpu_custom_call.1']
    %18 = vsyncpa [#allocation8], 0
    %s19 = scalar_lea.sflag [#allocation8], 1
    %20 = vsyncpa %s19, 0
    %21 = vsyncpa [#allocation9], 0
    %s22 = scalar_lea.sflag [#allocation9], 1
    %23 = vsyncpa %s22, 0
    %24 = vsyncpa [#allocation12], 0
    %s25 = scalar_lea.sflag [#allocation12], 1
    %26 = vsyncpa %s25, 0
    loop: start=0, step=1, limit=4
    $region2: #{tpu_custom_call.1} parent=1 // loop_pre_header
      _
    $region3: #{tpu_custom_call.1} parent=1 // loop_header
      %s28 = sphi 0, %s32
      %p29 = scmp.ge.s32.totalorder %s28, 4
      %s35 = sphi 0, %s54
      %s36 = sphi 0, %s50
      %s37 = sphi 0, %s46
      %s38 = sphi 0, %s35
      %s39 = sphi 0, %s36
      %s40 = sphi 0, %s37
      %s41 = sphi 0, %s38
      %s42 = sphi 0, %s39
      %s43 = sphi 0, %s40
      %s57 = sphi 0, %s59
      %s60 = sphi 0, %s57
      %s61 = sphi 0, %s60
      %s77 = sphi 0, %s61
      %s85 = sphi 0, %s87
      %s88 = sphi 0, %s85
      %s89 = sphi 0, %s88
      %s105 = sphi 0, %s89
      %s113 = sphi 0, %s115
      %s116 = sphi 0, %s113
      %s117 = sphi 0, %s116
      %s133 = sphi 0, %s117
      %s141 = sphi 0, %s143
      %s144 = sphi 0, %s141
      %s145 = sphi 0, %s144
      %s161 = sphi 0, %s145
      %s169 = sphi 0, %s171
      %s172 = sphi 0, %s169
      %s173 = sphi 0, %s172
      %s189 = sphi 0, %s173
      %s199 = sphi 0, %s201
      %s202 = sphi 0, %s199
      %s203 = sphi 0, %s202
      %s219 = sphi 0, %s203
    $region4: #{tpu_custom_call.1} parent=1 // loop_header_branch
      %31 = sbr.rel (%p29) target = $region8
    $region5: #{tpu_custom_call.1} parent=1 // loop_body
      %s33 = ssub.s32 %s28, 1
      %s34 = ssub.s32 %s28, 2
      %s44 = sadd.s32 1, %s37
      %p45 = scmp.ge.s32.totalorder %s44, 1
      %s46 = scalar_select %p45, 0, %s44
      %s47 = sadd.s32 1, %s36
      %s48 = scalar_select %p45, %s47, %s36
      %p49 = scmp.ge.s32.totalorder %s48, 1
      %s50 = scalar_select %p49, 0, %s48
      %s51 = sadd.s32 1, %s35
      %s52 = scalar_select %p49, %s51, %s35
      %p53 = scmp.ge.s32.totalorder %s52, 2
      %s54 = scalar_select %p53, 0, %s52
      %s55 = ssub.s32 %s36, %s50
      %p56 = scmp.eq.s32.totalorder %s55, 0
      %s58 = sadd.s32 %s57, 1
      %s59 = scalar_select %p56, %s57, %s58
      %p62 = pneg %p56
      %p63 = scmp.eq.s32.totalorder %s28, 1
      %p64 = por %p62, %p63
      %p65 = scmp.ne.s32.totalorder %s57, %s60
      %p66 = scmp.eq.s32.totalorder %s28, 0
      %p67 = por %p65, %p66
      %p68 = scmp.ne.s32.totalorder %s57, %s60
      %p69 = scmp.eq.s32.totalorder %s33, 1
      %p70 = por %p68, %p69
      %p71 = scmp.ne.s32.totalorder %s60, %s61
      %p72 = scmp.eq.s32.totalorder %s33, 0
      %p73 = por %p71, %p72
      %p74 = scmp.ne.s32.totalorder %s60, %s61
      %p75 = scmp.eq.s32.totalorder %s34, 1
      %p76 = por %p74, %p75
      %p78 = scmp.ne.s32.totalorder %s61, %s77
      %p79 = scmp.eq.s32.totalorder %s34, 0
      %p80 = por %p78, %p79
      %s81 = ssub.s32 %s35, %s54
      %s82 = ssub.s32 %s37, %s46
      %s83 = sor.u32 %s81, %s82
      %p84 = scmp.eq.s32.totalorder %s83, 0
      %s86 = sadd.s32 %s85, 1
      %s87 = scalar_select %p84, %s85, %s86
      %p90 = pneg %p84
      %p91 = scmp.eq.s32.totalorder %s28, 1
      %p92 = por %p90, %p91
      %p93 = scmp.ne.s32.totalorder %s85, %s88
      %p94 = scmp.eq.s32.totalorder %s28, 0
      %p95 = por %p93, %p94
      %p96 = scmp.ne.s32.totalorder %s85, %s88
      %p97 = scmp.eq.s32.totalorder %s33, 1
      %p98 = por %p96, %p97
      %p99 = scmp.ne.s32.totalorder %s88, %s89
      %p100 = scmp.eq.s32.totalorder %s33, 0
      %p101 = por %p99, %p100
      %p102 = scmp.ne.s32.totalorder %s88, %s89
      %p103 = scmp.eq.s32.totalorder %s34, 1
      %p104 = por %p102, %p103
      %p106 = scmp.ne.s32.totalorder %s89, %s105
      %p107 = scmp.eq.s32.totalorder %s34, 0
      %p108 = por %p106, %p107
      %s109 = ssub.s32 %s35, %s54
      %s110 = ssub.s32 %s37, %s46
      %s111 = sor.u32 %s109, %s110
      %p112 = scmp.eq.s32.totalorder %s111, 0
      %s114 = sadd.s32 %s113, 1
      %s115 = scalar_select %p112, %s113, %s114
      %p118 = pneg %p112
      %p119 = scmp.eq.s32.totalorder %s28, 1
      %p120 = por %p118, %p119
      %p121 = scmp.ne.s32.totalorder %s113, %s116
      %p122 = scmp.eq.s32.totalorder %s28, 0
      %p123 = por %p121, %p122
      %p124 = scmp.ne.s32.totalorder %s113, %s116
      %p125 = scmp.eq.s32.totalorder %s33, 1
      %p126 = por %p124, %p125
      %p127 = scmp.ne.s32.totalorder %s116, %s117
      %p128 = scmp.eq.s32.totalorder %s33, 0
      %p129 = por %p127, %p128
      %p130 = scmp.ne.s32.totalorder %s116, %s117
      %p131 = scmp.eq.s32.totalorder %s34, 1
      %p132 = por %p130, %p131
      %p134 = scmp.ne.s32.totalorder %s117, %s133
      %p135 = scmp.eq.s32.totalorder %s34, 0
      %p136 = por %p134, %p135
      %s137 = ssub.s32 %s35, %s54
      %s138 = ssub.s32 %s36, %s50
      %s139 = sor.u32 %s137, %s138
      %p140 = scmp.eq.s32.totalorder %s139, 0
      %s142 = sadd.s32 %s141, 1
      %s143 = scalar_select %p140, %s141, %s142
      %p146 = pneg %p140
      %p147 = scmp.eq.s32.totalorder %s28, 1
      %p148 = por %p146, %p147
      %p149 = scmp.ne.s32.totalorder %s141, %s144
      %p150 = scmp.eq.s32.totalorder %s28, 0
      %p151 = por %p149, %p150
      %p152 = scmp.ne.s32.totalorder %s141, %s144
      %p153 = scmp.eq.s32.totalorder %s33, 1
      %p154 = por %p152, %p153
      %p155 = scmp.ne.s32.totalorder %s144, %s145
      %p156 = scmp.eq.s32.totalorder %s33, 0
      %p157 = por %p155, %p156
      %p158 = scmp.ne.s32.totalorder %s144, %s145
      %p159 = scmp.eq.s32.totalorder %s34, 1
      %p160 = por %p158, %p159
      %p162 = scmp.ne.s32.totalorder %s145, %s161
      %p163 = scmp.eq.s32.totalorder %s34, 0
      %p164 = por %p162, %p163
      %s165 = ssub.s32 %s35, %s54
      %s166 = ssub.s32 %s36, %s50
      %s167 = sor.u32 %s165, %s166
      %p168 = scmp.eq.s32.totalorder %s167, 0
      %s170 = sadd.s32 %s169, 1
      %s171 = scalar_select %p168, %s169, %s170
      %p174 = pneg %p168
      %p175 = scmp.eq.s32.totalorder %s28, 1
      %p176 = por %p174, %p175
      %p177 = scmp.ne.s32.totalorder %s169, %s172
      %p178 = scmp.eq.s32.totalorder %s28, 0
      %p179 = por %p177, %p178
      %p180 = scmp.ne.s32.totalorder %s169, %s172
      %p181 = scmp.eq.s32.totalorder %s33, 1
      %p182 = por %p180, %p181
      %p183 = scmp.ne.s32.totalorder %s172, %s173
      %p184 = scmp.eq.s32.totalorder %s33, 0
      %p185 = por %p183, %p184
      %p186 = scmp.ne.s32.totalorder %s172, %s173
      %p187 = scmp.eq.s32.totalorder %s34, 1
      %p188 = por %p186, %p187
      %p190 = scmp.ne.s32.totalorder %s173, %s189
      %p191 = scmp.eq.s32.totalorder %s34, 0
      %p192 = por %p190, %p191
      %s193 = ssub.s32 %s35, %s54
      %s194 = ssub.s32 %s36, %s50
      %s195 = sor.u32 %s193, %s194
      %s196 = ssub.s32 %s37, %s46
      %s197 = sor.u32 %s195, %s196
      %p198 = scmp.eq.s32.totalorder %s197, 0
      %s200 = sadd.s32 %s199, 1
      %s201 = scalar_select %p198, %s199, %s200
      %p204 = pneg %p198
      %p205 = scmp.eq.s32.totalorder %s28, 1
      %p206 = por %p204, %p205
      %p207 = scmp.ne.s32.totalorder %s199, %s202
      %p208 = scmp.eq.s32.totalorder %s28, 0
      %p209 = por %p207, %p208
      %p210 = scmp.ne.s32.totalorder %s199, %s202
      %p211 = scmp.eq.s32.totalorder %s33, 1
      %p212 = por %p210, %p211
      %p213 = scmp.ne.s32.totalorder %s202, %s203
      %p214 = scmp.eq.s32.totalorder %s33, 0
      %p215 = por %p213, %p214
      %p216 = scmp.ne.s32.totalorder %s202, %s203
      %p217 = scmp.eq.s32.totalorder %s34, 1
      %p218 = por %p216, %p217
      %p220 = scmp.ne.s32.totalorder %s203, %s219
      %p221 = scmp.eq.s32.totalorder %s34, 0
      %p222 = por %p220, %p221
      %p223 = scmp.le.s32.totalorder 1, %s28
      %p224 = scmp.lt.s32.totalorder %s28, 3
      %p225 = pnand %p223, %p224
      %p226 = pneg %p225
      // Predicated region
      $region9: #{tpu_custom_call.1} parent=5 // pred_check
        _
      $region10: #{tpu_custom_call.1} parent=5 // pred_check_branch
        %228 = sbr.rel (%p225) target = $region12
      $region11: #{tpu_custom_call.1} parent=5 // pred_region
        %s229 = ssub.s32 %s28, 1
        // Predicated region
        $region13: #{tpu_custom_call.1} parent=11 // pred_check
          %p230 = pneg %p73
        $region14: #{tpu_custom_call.1} parent=11 // pred_check_branch
          %232 = sbr.rel (%p230) target = $region16
        $region15: #{tpu_custom_call.1} parent=11 // pred_region
          %p233 = scmp.lt.s32.totalorder %s39, 0
          %s234 = scalar_select %p233, %s39, 0
          %s235 = smul.addr %s234, 8
          %s236 = scalar_lea.vmem %s1, %s235
        $region16: #{tpu_custom_call.1} parent=11 // pred_fallthru
          _
      $region12: #{tpu_custom_call.1} parent=5 // pred_fallthru
        _
      %p237 = scmp.lt.s32.totalorder %s28, 2
      // Predicated region
      $region17: #{tpu_custom_call.1} parent=5 // pred_check
        %p238 = pneg %p237
      $region18: #{tpu_custom_call.1} parent=5 // pred_check_branch
        %240 = sbr.rel (%p238) target = $region20
      $region19: #{tpu_custom_call.1} parent=5 // pred_region
        // Predicated region
        $region21: #{tpu_custom_call.1} parent=19 // pred_check
          %p241 = pneg %p95
        $region22: #{tpu_custom_call.1} parent=19 // pred_check_branch
          %243 = sbr.rel (%p241) target = $region24
        $region23: #{tpu_custom_call.1} parent=19 // pred_region
          %s244 = sand.u32 %s85, 1
          %s245 = scalar_lea.sflag [#allocation8], %s244
          %s246 = sand.u32 %s85, 1
          %s247 = smul.addr %s246, 32
          %s248 = scalar_lea.vmem [#allocation7], %s247
          %s250 = ssub.s32 512, 512
          %251 = vsyncadd %s245, %s250
          %s252 = smul.addr %s35, 4
          %s253 = sadd.s32 %s37, %s252
          %s254 = smul.addr %s253, 128
          %s255 = scalar_lea.hbm %s2, %s254
          %s256 = sshll.u32 %s248, 4
          %s257 = int_to_ptr.vmem [resolvable:$true] %s256
          %262 = dma.hbm_to_vmem [thread:$0]  %s255, 512, %s257, %s245, 128, 128, 8
        $region24: #{tpu_custom_call.1} parent=19 // pred_fallthru
          _
        // Predicated region
        $region25: #{tpu_custom_call.1} parent=19 // pred_check
          %p263 = pneg %p123
        $region26: #{tpu_custom_call.1} parent=19 // pred_check_branch
          %265 = sbr.rel (%p263) target = $region28
        $region27: #{tpu_custom_call.1} parent=19 // pred_region
          %p266 = scmp.lt.s32.totalorder %s35, 1
          %s267 = scalar_select %p266, %s35, 1
          %p268 = scmp.lt.s32.totalorder %s37, 0
          %s269 = scalar_select %p268, %s37, 0
          %s270 = sadd.s32 %s269, %s267
          %s271 = scalar_lea.vmem %s3, %s270
        $region28: #{tpu_custom_call.1} parent=19 // pred_fallthru
          _
        // Predicated region
        $region29: #{tpu_custom_call.1} parent=19 // pred_check
          %p272 = pneg %p151
        $region30: #{tpu_custom_call.1} parent=19 // pred_check_branch
          %274 = sbr.rel (%p272) target = $region32
        $region31: #{tpu_custom_call.1} parent=19 // pred_region
          %p275 = scmp.lt.s32.totalorder %s35, 1
          %s276 = scalar_select %p275, %s35, 1
          %p277 = scmp.lt.s32.totalorder %s36, 0
          %s278 = scalar_select %p277, %s36, 0
          %s279 = sadd.s32 %s278, %s276
          %s280 = smul.addr %s279, 8
          %s281 = scalar_lea.vmem %s4, %s280
        $region32: #{tpu_custom_call.1} parent=19 // pred_fallthru
          _
      $region20: #{tpu_custom_call.1} parent=5 // pred_fallthru
        _
      %p282 = scmp.le.s32.totalorder 1, %s28
      %p283 = scmp.lt.s32.totalorder %s28, 3
      %p284 = pnand %p282, %p283
      %p285 = pneg %p284
      // Predicated region
      $region33: #{tpu_custom_call.1} parent=5 // pred_check
        _
      $region34: #{tpu_custom_call.1} parent=5 // pred_check_branch
        %287 = sbr.rel (%p284) target = $region36
      $region35: #{tpu_custom_call.1} parent=5 // pred_region
        %s288 = ssub.s32 %s28, 1
        %s289 = sand.u32 %s88, 1
        %s290 = scalar_lea.sflag [#allocation8], %s289
        %s291 = sand.u32 %s88, 1
        %s292 = smul.addr %s291, 32
        %s293 = scalar_lea.vmem [#allocation7], %s292
        // Predicated region
        $region37: #{tpu_custom_call.1} parent=35 // pred_check
          %p294 = pneg %p101
        $region38: #{tpu_custom_call.1} parent=35 // pred_check_branch
          %296 = sbr.rel (%p294) target = $region40
        $region39: #{tpu_custom_call.1} parent=35 // pred_region
          %297 = dma.done %s290, 512
        $region40: #{tpu_custom_call.1} parent=35 // pred_fallthru
          _
        %p298 = scmp.lt.s32.totalorder %s39, 0
        %s299 = scalar_select %p298, %s39, 0
        %s300 = smul.addr %s299, 8
        %s301 = scalar_lea.vmem %s1, %s300
        %p302 = pneg %p73
        %p303 = pneg %p70
        %s304 = sand.u32 %s88, 1
        %s305 = scalar_lea.sflag [#allocation8], %s304
        %s306 = sand.u32 %s88, 1
        %s307 = smul.addr %s306, 32
        %s308 = scalar_lea.vmem [#allocation7], %s307
        %p309 = pneg %p101
        %p310 = pneg %p98
        %p311 = scmp.lt.s32.totalorder %s38, 1
        %s312 = scalar_select %p311, %s38, 1
        %p313 = scmp.lt.s32.totalorder %s40, 0
        %s314 = scalar_select %p313, %s40, 0
        %s315 = sadd.s32 %s314, %s312
        %s316 = scalar_lea.vmem %s3, %s315
        %p317 = pneg %p129
        %p318 = pneg %p126
        %p319 = scmp.lt.s32.totalorder %s38, 1
        %s320 = scalar_select %p319, %s38, 1
        %p321 = scmp.lt.s32.totalorder %s39, 0
        %s322 = scalar_select %p321, %s39, 0
        %s323 = sadd.s32 %s322, %s320
        %s324 = smul.addr %s323, 8
        %s325 = scalar_lea.vmem %s4, %s324
        %p326 = pneg %p157
        %p327 = pneg %p154
        %p328 = pneg %p185
        %p329 = pneg %p182
        %s330 = sand.u32 %s172, 1
        %s331 = scalar_lea.sflag [#allocation9], %s330
        %s332 = sand.u32 %s172, 1
        %s333 = smul.addr %s332, 8
        %s334 = scalar_lea.vmem [#allocation10], %s333
        %p335 = pneg %p215
        %p336 = pneg %p212
        %s337 = sand.u32 %s202, 1
        %s338 = scalar_lea.sflag [#allocation12], %s337
        %s339 = sand.u32 %s202, 1
        %s340 = smul.addr %s339, 8
        %s341 = scalar_lea.vmem [#allocation11], %s340
        %p342 = scmp.lt.s32.totalorder %s39, 0
        %s343 = scalar_select %p342, %s39, 0
        %s344 = smul.addr %s343, 8
        %s345 = scalar_lea.vmem %s1, %s344
        %p346 = scmp.lt.s32.totalorder %s38, 1
        %s347 = scalar_select %p346, %s38, 1
        %p348 = scmp.lt.s32.totalorder %s40, 0
        %s349 = scalar_select %p348, %s40, 0
        %s350 = sadd.s32 %s349, %s347
        %s351 = scalar_lea.vmem %s3, %s350
        %p352 = scmp.lt.s32.totalorder %s38, 1
        %s353 = scalar_select %p352, %s38, 1
        %p354 = scmp.lt.s32.totalorder %s39, 0
        %s355 = scalar_select %p354, %s39, 0
        %s356 = sadd.s32 %s355, %s353
        %s357 = smul.addr %s356, 8
        %s358 = scalar_lea.vmem %s4, %s357
        %p359 = scmp.eq.s32.totalorder %s40, 0
        // Predicated region
        $region41: #{tpu_custom_call.1} parent=35 // pred_check
          %p360 = pneg %p359
        $region42: #{tpu_custom_call.1} parent=35 // pred_check_branch
          %362 = sbr.rel (%p360) target = $region44
        $region43: #{tpu_custom_call.1} parent=35 // pred_region
          %vm363 = vcmask 7168
          %364 = vst.msk [vmem:[#allocation2] sm:$0xff] %vm363, -inf
          %365 = vst.msk [vmem:[#allocation3] sm:$0xff] %vm363, 0.0
          %366 = vst.msk [vmem:[#allocation4] sm:$0xff] %vm363, 0.0
        $region44: #{tpu_custom_call.1} parent=35 // pred_fallthru
          _
        %v367 = vld [vmem:[%s358] sm:$0xff]
        %s368 = sld [smem:[#allocation6 + %s38]]
        %v369 = vld [vmem:[%s345] sm:$0xff]
        %v370 = vld [vmem:[%s293] sm:$0xff]
        %v371 = vld [vmem:[%s293 + $0x8] sm:$0xff]
        %v372 = vld [vmem:[%s293 + $0x10] sm:$0xff]
        %v373 = vld [vmem:[%s293 + $0x18] sm:$0xff]
        %vm374 = vcmask 261120
        %v376 = vsel %vm374, %v369, 0
        %378 = vmatprep.subr.mxu0 0.0
        %379 = vmatpush1.msra.mxu0 %v370
        %380 = vmatprep.subr.mxu0 0.0
        %381 = vmatpush1.msra.mxu0 %v371
        %382 = vmatprep.subr.mxu0 0.0
        %383 = vmatpush1.msra.mxu0 %v372
        %384 = vmatprep.subr.mxu0 0.0
        %385 = vmatpush1.msra.mxu0 %v373
        %386 = vmatprep.subr.mxu0 0.0
        %387 = vmatpush1.msra.mxu0 0.0
        %388 = vmatprep.subr.mxu0 0.0
        %389 = vmatpush1.msra.mxu0 0.0
        %390 = vmatprep.subr.mxu0 0.0
        %391 = vmatpush1.msra.mxu0 0.0
        %392 = vmatprep.subr.mxu0 0.0
        %393 = vmatpush1.msra.mxu0 0.0
        %394 = vmatprep.subr.mxu0 0.0
        %395 = vmatpush1.msra.mxu0 0.0
        %396 = vmatprep.subr.mxu0 0.0
        %397 = vmatpush1.msra.mxu0 0.0
        %398 = vmatprep.subr.mxu0 0.0
        %399 = vmatpush1.msra.mxu0 0.0
        %400 = vmatprep.subr.mxu0 0.0
        %401 = vmatpush1.msra.mxu0 0.0
        %402 = vmatprep.subr.mxu0 0.0
        %403 = vmatpush1.msra.mxu0 0.0
        %404 = vmatprep.subr.mxu0 0.0
        %405 = vmatpush1.msra.mxu0 0.0
        %406 = vmatprep.subr.mxu0 0.0
        %407 = vmatpush1.msra.mxu0 0.0
        %408 = vmatprep.subr.mxu0 0.0
        %409 = vmatpush1.msra.mxu0 0.0
        %410 = vmatprep.subr.mxu0 0.0
        %411 = vmatpush1.msra.mxu0 0.0
        %412 = vmatprep.subr.mxu0 0.0
        %413 = vmatpush1.msra.mxu0 0.0
        %414 = vmatprep.subr.mxu0 0.0
        %415 = vmatpush1.msra.mxu0 0.0
        %416 = vmatprep.subr.mxu0 0.0
        %417 = vmatpush1.msra.mxu0 0.0
        %418 = vmatprep.subr.mxu0 0.0
        %419 = vmatpush1.msra.mxu0 0.0
        %420 = vmatprep.subr.mxu0 0.0
        %421 = vmatpush1.msra.mxu0 0.0
        %422 = vmatprep.subr.mxu0 0.0
        %423 = vmatpush1.msra.mxu0 0.0
        %424 = vmatprep.subr.mxu0 0.0
        %425 = vmatpush1.msra.mxu0 0.0
        %426 = vmatprep.subr.mxu0 0.0
        %427 = vmatpush1.msra.mxu0 0.0
        %428 = vmatprep.subr.mxu0 0.0
        %429 = vmatpush1.msra.mxu0 0.0
        %430 = vmatprep.subr.mxu0 0.0
        %431 = vmatpush1.msra.mxu0 0.0
        %432 = vmatprep.subr.mxu0 0.0
        %433 = vmatpush1.msra.mxu0 0.0
        %434 = vmatprep.subr.mxu0 0.0
        %435 = vmatpush1.msra.mxu0 0.0
        %436 = vmatprep.subr.mxu0 0.0
        %437 = vmatpush1.msra.mxu0 0.0
        %438 = vmatprep.subr.mxu0 0.0
        %439 = vmatpush1.msra.mxu0 0.0
        %440 = vmatprep.subr.mxu0 0.0
        %441 = vmatpush1.msra.mxu0 0.0
        %442 = vmatprep.mubr.f32.mxu0 0.0
        %443 = vmatmul.mubr.f32.gmra.mrb[0].mxu0 %v376
        %v444 = vpop.f32.mrb[0].mxu0
        %v445 = vadd.f32 0.0, %v444
        %v446 = vpop.f32.mrb[0].mxu0
        %447 = vdwg.mxu0
        %v448 = vld [vmem:[%s351] sm:$0x1]
        %v450 = vlaneseq
        %v451 = vshrl.u32 %v450, 7
        %v452 = vsub.s32 0, %v451
        %v453 = vrot.slane %v448, %v452
        %v455 = vmul.f32 %v445, %v453
        %v456 = vlaneseq
        %v457 = vand.u32 %v456, 127
        %s458 = smul.u32 %s40, 128
        %v459 = vstv %s458
        %v460 = vadd.s32 %v457, %v459
        %v461 = vstv %s368
        %vm462 = vcmp.lt.s32.totalorder %v460, %v461
        %v463 = vsel %vm462, %v455, -1e+30
        %464 = vst [vmem:[%s341] sm:$0xff] %v463
        %v465 = vld [vmem:[#allocation2] sm:$0xff]
        %466 = vmax.xlane.f32.xlu0 %v463
        %v467 = vpop.xlane.xlu0 %466
        %v468 = vmax.f32 %v465, %v467
        %v469 = vsub.f32 %v465, %v468
        %v470 = vmul.f32 %v469, 1.442695
        %v471 = vpow.pop %v470
        %v472 = vld [vmem:[#allocation3] sm:$0xff]
        %v473 = vmul.f32 %v471, %v472
        %475 = vset.pattern.permute.xlu0 0
        %476 = vperm.xlu0 %475, %v468
        %v477 = vpop.permute.xlu0 %476
        %v479 = vsub.f32 %v463, %v477
        %v480 = vmul.f32 %v479, 1.442695
        %v481 = vpow.pop %v480
        %482 = vadd.xlane.f32.xlu0 %v481
        %v483 = vpop.xlane.xlu0 %482
        %v484 = vadd.f32 %v473, %v483
        %vm485 = vcmask 7168
        %486 = vst.msk [vmem:[#allocation3] sm:$0xff] %vm485, %v484
        %487 = vst.msk [vmem:[#allocation2] sm:$0xff] %vm485, %v468
        %v488 = vld [vmem:[#allocation4] sm:$0xff]
        %489 = vset.pattern.permute.xlu0 0
        %490 = vperm.xlu0 %489, %v367
        %v491 = vpop.permute.xlu0 %490
        %vm492 = vcmp.eq.s32.totalorder %v460, %v491
        %v493 = vsel %vm492, %v463, 0.0
        %494 = vadd.xlane.f32.xlu0 %v493
        %v495 = vpop.xlane.xlu0 %494
        %v496 = vadd.f32 %v488, %v495
        %497 = vst.msk [vmem:[#allocation4] sm:$0xff] %vm485, %v496
        // Predicated region
        $region45: #{tpu_custom_call.1} parent=35 // pred_check
          %p498 = pneg %p359
        $region46: #{tpu_custom_call.1} parent=35 // pred_check_branch
          %500 = sbr.rel (%p498) target = $region48
        $region47: #{tpu_custom_call.1} parent=35 // pred_region
          %v501 = vld [vmem:[#allocation3] sm:$0xff]
          %v502 = vlog2.pop %v501
          %v503 = vmul.f32 %v502, 0.6931472
          %v504 = vadd.f32 %v468, %v503
          %vm505 = vcmp.ge.s32.totalorder %v367, 0
          %v506 = vld [vmem:[#allocation4] sm:$0xff]
          %v507 = vsub.f32 %v504, %v506
          %v508 = vsel %vm505, %v507, 0.0
          %v509 = vsel %vm485, %v508, 0.0
          %510 = vadd.xlane.f32.xlu0 %v509
          %v511 = vpop.xlane.xlu0 %510
          %v512 = vrot.slane %v511, 4
          %v513 = vadd.f32 %v511, %v512
          %v514 = vrot.slane %v513, 2
          %v515 = vadd.f32 %v513, %v514
          %v516 = vrot.slane %v515, 1
          %v517 = vadd.f32 %v515, %v516
          %s518 = vtos %v517
          %s519 = smul.f32 %s518, 0.125
          %v520 = vstv %s519
          %v521 = vadd.f32 %v520, 0.0
          %522 = vst [vmem:[%s334] sm:$0xff] %v521
        $region48: #{tpu_custom_call.1} parent=35 // pred_fallthru
          _
        %s523 = sand.u32 %s172, 1
        %s524 = scalar_lea.sflag [#allocation9], %s523
        %s525 = sand.u32 %s172, 1
        %s526 = smul.addr %s525, 8
        %s527 = scalar_lea.vmem [#allocation10], %s526
        %s528 = sand.u32 %s202, 1
        %s529 = scalar_lea.sflag [#allocation12], %s528
        %s530 = sand.u32 %s202, 1
        %s531 = smul.addr %s530, 8
        %s532 = scalar_lea.vmem [#allocation11], %s531
        // Predicated region
        $region49: #{tpu_custom_call.1} parent=35 // pred_check
          %p533 = pneg %p182
        $region50: #{tpu_custom_call.1} parent=35 // pred_check_branch
          %535 = sbr.rel (%p533) target = $region52
        $region51: #{tpu_custom_call.1} parent=35 // pred_region
          %s537 = ssub.s32 128, 128
          %538 = vsyncadd %s524, %s537
          %s539 = sadd.s32 %s39, %s38
          %s540 = smul.addr %s539, 128
          %s541 = scalar_lea.hbm %s5, %s540
          %s543 = sshll.u32 %s527, 4
          %s544 = int_to_ptr.vmem [resolvable:$true] %s543
          %546 = dma.vmem_to_hbm [thread:$0]  %s544, 128, %s541, %s524
        $region52: #{tpu_custom_call.1} parent=35 // pred_fallthru
          _
        // Predicated region
        $region53: #{tpu_custom_call.1} parent=35 // pred_check
          %p547 = pneg %p212
        $region54: #{tpu_custom_call.1} parent=35 // pred_check_branch
          %549 = sbr.rel (%p547) target = $region56
        $region55: #{tpu_custom_call.1} parent=35 // pred_region
          %s551 = ssub.s32 128, 128
          %552 = vsyncadd %s529, %s551
          %s553 = sadd.s32 %s40, %s39
          %s554 = sadd.s32 %s553, %s38
          %s555 = smul.addr %s554, 128
          %s556 = scalar_lea.hbm %s6, %s555
          %s558 = sshll.u32 %s532, 4
          %s559 = int_to_ptr.vmem [resolvable:$true] %s558
          %561 = dma.vmem_to_hbm [thread:$0]  %s559, 128, %s556, %s529
        $region56: #{tpu_custom_call.1} parent=35 // pred_fallthru
          _
      $region36: #{tpu_custom_call.1} parent=5 // pred_fallthru
        _
      %p562 = scmp.le.s32.totalorder 2, %s28
      // Predicated region
      $region57: #{tpu_custom_call.1} parent=5 // pred_check
        %p563 = pneg %p562
      $region58: #{tpu_custom_call.1} parent=5 // pred_check_branch
        %565 = sbr.rel (%p563) target = $region60
      $region59: #{tpu_custom_call.1} parent=5 // pred_region
        %s566 = ssub.s32 %s28, 2
        // Predicated region
        $region61: #{tpu_custom_call.1} parent=59 // pred_check
          %p567 = pneg %p188
        $region62: #{tpu_custom_call.1} parent=59 // pred_check_branch
          %569 = sbr.rel (%p567) target = $region64
        $region63: #{tpu_custom_call.1} parent=59 // pred_region
          %s570 = sand.u32 %s173, 1
          %s571 = scalar_lea.sflag [#allocation9], %s570
          %s572 = sand.u32 %s173, 1
          %s573 = smul.addr %s572, 8
          %s574 = scalar_lea.vmem [#allocation10], %s573
          %575 = dma.done %s571, 128
        $region64: #{tpu_custom_call.1} parent=59 // pred_fallthru
          _
        // Predicated region
        $region65: #{tpu_custom_call.1} parent=59 // pred_check
          %p576 = pneg %p218
        $region66: #{tpu_custom_call.1} parent=59 // pred_check_branch
          %578 = sbr.rel (%p576) target = $region68
        $region67: #{tpu_custom_call.1} parent=59 // pred_region
          %s579 = sand.u32 %s203, 1
          %s580 = scalar_lea.sflag [#allocation12], %s579
          %s581 = sand.u32 %s203, 1
          %s582 = smul.addr %s581, 8
          %s583 = scalar_lea.vmem [#allocation11], %s582
          %584 = dma.done %s580, 128
        $region68: #{tpu_custom_call.1} parent=59 // pred_fallthru
          _
      $region60: #{tpu_custom_call.1} parent=5 // pred_fallthru
        _
    $region6: #{tpu_custom_call.1} parent=1 // loop_footer
      %s32 = sadd.s32 1, %s28
    $region7: #{tpu_custom_call.1} parent=1 // loop_footer_branch
      %27 = sbr.rel target = $region3
    $region8: #{tpu_custom_call.1} parent=1 // loop_exit
      _
    %585 = vsyncpa [#allocation8], 1
    %s586 = scalar_lea.sflag [#allocation8], 1
    %587 = vsyncpa %s586, 1
    %588 = vsyncpa [#allocation9], 1
    %s589 = scalar_lea.sflag [#allocation9], 1
    %590 = vsyncpa %s589, 1
    %591 = vsyncpa [#allocation12], 1
    %s592 = scalar_lea.sflag [#allocation12], 1
    %593 = vsyncpa %s592, 1

</llo_original>
